<compile_context>
chip_gen: v7x
topology: tpu7x:2x2x1
jax: 0.10.0
libtpu: 0.0.40
codegen_flags: <defaults>
</compile_context>

<pallas_src>
import functools

import jax
import jax.numpy as jnp
from jax import lax
from jax.experimental import pallas as pl
from jax.experimental.pallas import tpu as pltpu


def lstm_linear_kernel(x_ref, wih_ref, whh_ref, b_ref, wout_ref, bout_ref,
                       out_ref, xg_ref, *, hidden_size: int, seq_len: int):
    """Full LSTM recurrence + final linear projection for one batch tile.

    x_ref    : (T, Bb, I)   time-major input tile
    wih_ref  : (I, 4H)      input->gates weights (transposed)
    whh_ref  : (H, 4H)      hidden->gates weights (transposed)
    b_ref    : (1, 4H)      b_ih + b_hh
    wout_ref : (H, O)       linear weights (transposed)
    bout_ref : (1, O)       linear bias
    out_ref  : (Bb, O)      result = Linear(h_T)
    xg_ref   : (T, Bb, 4H)  VMEM scratch for the precomputed input projection
    """
    H = hidden_size
    T = seq_len
    Bb = x_ref.shape[1]
    I = x_ref.shape[2]

    # ---- Phase 1: fused input projection for the whole tile (one MXU pass) ----
    x2d = x_ref[...].astype(jnp.float32).reshape(T * Bb, I)           # (T*Bb, I)
    wih = wih_ref[...].astype(jnp.float32)                            # (I, 4H)
    bias = b_ref[...].astype(jnp.float32)                             # (1, 4H)
    xg2d = jnp.dot(x2d, wih, preferred_element_type=jnp.float32) + bias
    xg_ref[...] = xg2d.reshape(T, Bb, 4 * H)                          # stage in VMEM

    # ---- Phase 2: serial recurrence ----
    whh = whh_ref[...].astype(jnp.float32)                            # (H, 4H)

    # Lane-select constants (hoisted): g-lanes [2H, 3H) use tanh(x); the sigmoid
    # lanes use sigmoid(x) = 0.5 * (1 + tanh(x/2))  ->  one tanh pass per step.
    lane = lax.broadcasted_iota(jnp.int32, (Bb, 4 * H), 1)
    is_g_lane = jnp.logical_and(lane >= 2 * H, lane < 3 * H)
    pre_scale = jnp.where(is_g_lane, 1.0, 0.5)    # multiply before tanh
    post_bias = jnp.where(is_g_lane, 0.0, 0.5)    # act = pre_scale*tanh + post_bias

    def gate_activations(gates):
        t_act = jnp.tanh(gates * pre_scale)
        act = pre_scale * t_act + post_bias
        i_g = act[:, 0 * H:1 * H]
        f_g = act[:, 1 * H:2 * H]
        g_g = act[:, 2 * H:3 * H]
        o_g = act[:, 3 * H:4 * H]
        return i_g, f_g, g_g, o_g

    # Peel t = 0: h0 == c0 == 0, so the hidden-state matmul and f*c term vanish.
    i0, _, g0, o0 = gate_activations(xg_ref[0])
    c = i0 * g0
    h = o0 * jnp.tanh(c)

    def step(t, carry):
        h, c = carry
        gates = xg_ref[t] + jnp.dot(h, whh, preferred_element_type=jnp.float32)
        i_g, f_g, g_g, o_g = gate_activations(gates)
        c_new = f_g * c + i_g * g_g
        h_new = o_g * jnp.tanh(c_new)
        return (h_new, c_new)

    # T is static and small: fully unroll so MXU/EUP latency overlaps across steps.
    h_last, _ = lax.fori_loop(1, T, step, (h, c), unroll=True)

    # ---- Phase 3: linear head ----
    out = jnp.dot(h_last, wout_ref[...].astype(jnp.float32),
                  preferred_element_type=jnp.float32)
    out = out + bout_ref[...].astype(jnp.float32)
    out_ref[...] = out.astype(out_ref.dtype)


def lstm_module_forward(x, w_ih, w_hh, b_ih, b_hh, w_lin, b_lin):
    """Pallas-backed equivalent of LSTMModule.forward (num_layers=1).

    x     : (B, T, I)  batch_first, like PyTorch
    w_ih  : (4H, I), w_hh : (4H, H), b_ih/b_hh : (4H,)
    w_lin : (O, H),  b_lin: (O,)
    returns (B, O) float32
    """
    B, T, I = x.shape
    H = w_hh.shape[1]
    O = w_lin.shape[0]

    x_tbi = jnp.transpose(x, (1, 0, 2)).astype(jnp.float32)   # (T, B, I)
    wih_t = jnp.transpose(w_ih).astype(jnp.float32)           # (I, 4H)
    whh_t = jnp.transpose(w_hh).astype(jnp.float32)           # (H, 4H)
    bias = (b_ih + b_hh).reshape(1, 4 * H).astype(jnp.float32)
    wout_t = jnp.transpose(w_lin).astype(jnp.float32)         # (H, O)
    bout = b_lin.reshape(1, O).astype(jnp.float32)

    # Grid over batch tiles: the recurrence is serial in T but embarrassingly
    # parallel in B, so batch tiles shard across TensorCores ("parallel").
    block_b = B if B <= 128 else 128
    grid = (pl.cdiv(B, block_b),)

    kernel = functools.partial(lstm_linear_kernel, hidden_size=H, seq_len=T)

    return pl.pallas_call(
        kernel,
        out_shape=jax.ShapeDtypeStruct((B, O), jnp.float32),
        grid=grid,
        in_specs=[
            pl.BlockSpec((T, block_b, I), lambda b: (0, b, 0)),   # x  (batch-tiled)
            pl.BlockSpec((I, 4 * H), lambda b: (0, 0)),           # W_ih^T
            pl.BlockSpec((H, 4 * H), lambda b: (0, 0)),           # W_hh^T
            pl.BlockSpec((1, 4 * H), lambda b: (0, 0)),           # bias
            pl.BlockSpec((H, O), lambda b: (0, 0)),               # W_out^T
            pl.BlockSpec((1, O), lambda b: (0, 0)),               # b_out
        ],
        out_specs=pl.BlockSpec((block_b, O), lambda b: (b, 0)),
        scratch_shapes=[pltpu.VMEM((T, block_b, 4 * H), jnp.float32)],
        compiler_params=pltpu.CompilerParams(
            dimension_semantics=("parallel",)),
    )(x_tbi, wih_t, whh_t, bias, wout_t, bout)


def _reference_forward(x, w_ih, w_hh, b_ih, b_hh, w_lin, b_lin):
    """Pure-JAX reference with identical PyTorch LSTM semantics."""
    B, T, I = x.shape
    H = w_hh.shape[1]
    h = jnp.zeros((B, H), jnp.float32)
    c = jnp.zeros((B, H), jnp.float32)
    for t in range(T):
        gates = x[:, t, :] @ w_ih.T + b_ih + h @ w_hh.T + b_hh
        i_g = jax.nn.sigmoid(gates[:, 0 * H:1 * H])
        f_g = jax.nn.sigmoid(gates[:, 1 * H:2 * H])
        g_g = jnp.tanh(gates[:, 2 * H:3 * H])
        o_g = jax.nn.sigmoid(gates[:, 3 * H:4 * H])
        c = f_g * c + i_g * g_g
        h = o_g * jnp.tanh(c)
    return h @ w_lin.T + b_lin


if __name__ == "__main__":
    # Small shapes consistent with the module: batch=2, seq=8, input=4, hidden=32, output=1.
    B, T, I, H, O = 2, 8, 4, 32, 1

    key = jax.random.PRNGKey(0)
    keys = jax.random.split(key, 7)
    bound = 1.0 / jnp.sqrt(H)  # PyTorch default init range for LSTM / Linear

    x = jax.random.normal(keys[0], (B, T, I), dtype=jnp.float32)
    w_ih = jax.random.uniform(keys[1], (4 * H, I), minval=-bound, maxval=bound)
    w_hh = jax.random.uniform(keys[2], (4 * H, H), minval=-bound, maxval=bound)
    b_ih = jax.random.uniform(keys[3], (4 * H,), minval=-bound, maxval=bound)
    b_hh = jax.random.uniform(keys[4], (4 * H,), minval=-bound, maxval=bound)
    w_lin = jax.random.uniform(keys[5], (O, H), minval=-bound, maxval=bound)
    b_lin = jax.random.uniform(keys[6], (O,), minval=-bound, maxval=bound)

    out = lstm_module_forward(x, w_ih, w_hh, b_ih, b_hh, w_lin, b_lin)
    out = jax.block_until_ready(out)

    ref = _reference_forward(x, w_ih, w_hh, b_ih, b_hh, w_lin, b_lin)
    assert out.shape == (B, O)
    assert jnp.allclose(out, ref, atol=1e-5, rtol=1e-5), (out, ref)

    print("KERNEL_OK")
</pallas_src>

<mosaic_0001>
module attributes {stable_mosaic.version = 11 : i64} {
  func.func @lstm_linear_kernel(%arg0: i32, %arg1: memref<8x2x4xf32, #tpu.memory_space<vmem>>, %arg2: memref<4x128xf32, #tpu.memory_space<vmem>>, %arg3: memref<32x128xf32, #tpu.memory_space<vmem>>, %arg4: memref<1x128xf32, #tpu.memory_space<vmem>>, %arg5: memref<32x1xf32, #tpu.memory_space<vmem>>, %arg6: memref<1x1xf32, #tpu.memory_space<vmem>>, %arg7: memref<2x1xf32, #tpu.memory_space<vmem>>, %arg8: memref<8x2x128xf32, #tpu.memory_space<vmem>>) attributes {dimension_semantics = [#tpu.dimension_semantics<parallel>], iteration_bounds = array<i64: 1>, scalar_prefetch = 0 : i64, scratch_operands = 1 : i64, tpu.core_type = #tpu.core_type<tc>, window_params = [{transform_indices = @transform_0, window_bounds = array<i64: 8, 2, 4>}, {pipeline_mode = #tpu.pipeline_mode<synchronous>, transform_indices = @transform_1, window_bounds = array<i64: 4, 128>}, {pipeline_mode = #tpu.pipeline_mode<synchronous>, transform_indices = @transform_2, window_bounds = array<i64: 32, 128>}, {pipeline_mode = #tpu.pipeline_mode<synchronous>, transform_indices = @transform_3, window_bounds = array<i64: 1, 128>}, {pipeline_mode = #tpu.pipeline_mode<synchronous>, transform_indices = @transform_4, window_bounds = array<i64: 32, 1>}, {pipeline_mode = #tpu.pipeline_mode<synchronous>, transform_indices = @transform_5, window_bounds = array<i64: 1, 1>}, {transform_indices = @transform_6, window_bounds = array<i64: 2, 1>}]} {
    %c0 = arith.constant 0 : index
    %c0_0 = arith.constant 0 : index
    %c0_1 = arith.constant 0 : index
    %0 = vector.load %arg1[%c0, %c0_0, %c0_1] : memref<8x2x4xf32, #tpu.memory_space<vmem>>, vector<8x2x4xf32>
    %1 = vector.shape_cast %0 : vector<8x2x4xf32> to vector<16x4xf32>
    %c0_2 = arith.constant 0 : index
    %c0_3 = arith.constant 0 : index
    %2 = vector.load %arg2[%c0_2, %c0_3] : memref<4x128xf32, #tpu.memory_space<vmem>>, vector<4x128xf32>
    %c0_4 = arith.constant 0 : index
    %c0_5 = arith.constant 0 : index
    %3 = vector.load %arg4[%c0_4, %c0_5] : memref<1x128xf32, #tpu.memory_space<vmem>>, vector<1x128xf32>
    %cst = arith.constant dense<0.000000e+00> : vector<16x128xf32>
    %4 = tpu.matmul %1, %2, %cst {dimension_numbers = #tpu.dot_dimension_numbers<[1], [0], [0], [1], [0, 0, 1, 1], [], []>} : vector<16x4xf32>, vector<4x128xf32>, vector<16x128xf32> -> vector<16x128xf32>
    %5 = vector.broadcast %3 : vector<1x128xf32> to vector<16x128xf32>
    %6 = arith.addf %4, %5 : vector<16x128xf32>
    %7 = vector.shape_cast %6 : vector<16x128xf32> to vector<8x2x128xf32>
    %c0_6 = arith.constant 0 : index
    %c0_7 = arith.constant 0 : index
    %c0_8 = arith.constant 0 : index
    %8 = vector.load %arg8[%c0_6, %c0_7, %c0_8] : memref<8x2x128xf32, #tpu.memory_space<vmem>>, vector<8x2x128xf32>
    tpu.vector_store %arg8[%c0_6, %c0_7, %c0_8], %7 {strides = array<i32>} : memref<8x2x128xf32, #tpu.memory_space<vmem>>, vector<8x2x128xf32>,
    %c0_9 = arith.constant 0 : index
    %c0_10 = arith.constant 0 : index
    %9 = vector.load %arg3[%c0_9, %c0_10] : memref<32x128xf32, #tpu.memory_space<vmem>>, vector<32x128xf32>
    %10 = tpu.iota {dimensions = array<i32: 1>} : vector<2x128xi32>
    %c64_i32 = arith.constant 64 : i32
    %11 = vector.broadcast %c64_i32 : i32 to vector<2x128xi32>
    %12 = arith.cmpi sge, %10, %11 : vector<2x128xi32>
    %c96_i32 = arith.constant 96 : i32
    %13 = vector.broadcast %c96_i32 : i32 to vector<2x128xi32>
    %14 = arith.cmpi slt, %10, %13 : vector<2x128xi32>
    %15 = arith.andi %12, %14 : vector<2x128xi1>
    %cst_11 = arith.constant 1.000000e+00 : f32
    %cst_12 = arith.constant 5.000000e-01 : f32
    %16 = vector.broadcast %cst_11 : f32 to vector<2x128xf32>
    %17 = vector.broadcast %cst_12 : f32 to vector<2x128xf32>
    %18 = arith.select %15, %16, %17 : vector<2x128xi1>, vector<2x128xf32>
    %cst_13 = arith.constant 0.000000e+00 : f32
    %cst_14 = arith.constant 5.000000e-01 : f32
    %19 = vector.broadcast %cst_13 : f32 to vector<2x128xf32>
    %20 = vector.broadcast %cst_14 : f32 to vector<2x128xf32>
    %21 = arith.select %15, %19, %20 : vector<2x128xi1>, vector<2x128xf32>
    %c0_15 = arith.constant 0 : index
    %c0_16 = arith.constant 0 : index
    %c0_17 = arith.constant 0 : index
    %22 = vector.load %arg8[%c0_15, %c0_16, %c0_17] : memref<8x2x128xf32, #tpu.memory_space<vmem>>, vector<1x2x128xf32>
    %23 = vector.shape_cast %22 : vector<1x2x128xf32> to vector<2x128xf32>
    %24 = arith.mulf %23, %18 : vector<2x128xf32>
    %25 = math.tanh %24 : vector<2x128xf32>
    %26 = arith.mulf %18, %25 : vector<2x128xf32>
    %27 = arith.addf %26, %21 : vector<2x128xf32>
    %28 = vector.extract_strided_slice %27 {offsets = [0, 0], sizes = [2, 32], strides = [1, 1]} : vector<2x128xf32> to vector<2x32xf32>
    %29 = vector.extract_strided_slice %27 {offsets = [0, 64], sizes = [2, 32], strides = [1, 1]} : vector<2x128xf32> to vector<2x32xf32>
    %30 = vector.extract_strided_slice %27 {offsets = [0, 96], sizes = [2, 32], strides = [1, 1]} : vector<2x128xf32> to vector<2x32xf32>
    %31 = arith.mulf %28, %29 : vector<2x32xf32>
    %32 = math.tanh %31 : vector<2x32xf32>
    %33 = arith.mulf %30, %32 : vector<2x32xf32>
    %c1_i32 = arith.constant 1 : i32
    %34 = arith.index_cast %c1_i32 : i32 to index
    %c0_18 = arith.constant 0 : index
    %c0_19 = arith.constant 0 : index
    %35 = vector.load %arg8[%34, %c0_18, %c0_19] : memref<8x2x128xf32, #tpu.memory_space<vmem>>, vector<1x2x128xf32>
    %36 = vector.shape_cast %35 : vector<1x2x128xf32> to vector<2x128xf32>
    %cst_20 = arith.constant dense<0.000000e+00> : vector<2x128xf32>
    %37 = tpu.matmul %33, %9, %cst_20 {dimension_numbers = #tpu.dot_dimension_numbers<[1], [0], [0], [1], [0, 0, 1, 1], [], []>} : vector<2x32xf32>, vector<32x128xf32>, vector<2x128xf32> -> vector<2x128xf32>
    %38 = arith.addf %36, %37 : vector<2x128xf32>
    %39 = arith.mulf %38, %18 : vector<2x128xf32>
    %40 = math.tanh %39 : vector<2x128xf32>
    %41 = arith.mulf %18, %40 : vector<2x128xf32>
    %42 = arith.addf %41, %21 : vector<2x128xf32>
    %43 = vector.extract_strided_slice %42 {offsets = [0, 0], sizes = [2, 32], strides = [1, 1]} : vector<2x128xf32> to vector<2x32xf32>
    %44 = vector.extract_strided_slice %42 {offsets = [0, 32], sizes = [2, 32], strides = [1, 1]} : vector<2x128xf32> to vector<2x32xf32>
    %45 = vector.extract_strided_slice %42 {offsets = [0, 64], sizes = [2, 32], strides = [1, 1]} : vector<2x128xf32> to vector<2x32xf32>
    %46 = vector.extract_strided_slice %42 {offsets = [0, 96], sizes = [2, 32], strides = [1, 1]} : vector<2x128xf32> to vector<2x32xf32>
    %47 = arith.mulf %44, %31 : vector<2x32xf32>
    %48 = arith.mulf %43, %45 : vector<2x32xf32>
    %49 = arith.addf %47, %48 : vector<2x32xf32>
    %50 = math.tanh %49 : vector<2x32xf32>
    %51 = arith.mulf %46, %50 : vector<2x32xf32>
    %c2_i32 = arith.constant 2 : i32
    %52 = arith.index_cast %c2_i32 : i32 to index
    %c0_21 = arith.constant 0 : index
    %c0_22 = arith.constant 0 : index
    %53 = vector.load %arg8[%52, %c0_21, %c0_22] : memref<8x2x128xf32, #tpu.memory_space<vmem>>, vector<1x2x128xf32>
    %54 = vector.shape_cast %53 : vector<1x2x128xf32> to vector<2x128xf32>
    %cst_23 = arith.constant dense<0.000000e+00> : vector<2x128xf32>
    %55 = tpu.matmul %51, %9, %cst_23 {dimension_numbers = #tpu.dot_dimension_numbers<[1], [0], [0], [1], [0, 0, 1, 1], [], []>} : vector<2x32xf32>, vector<32x128xf32>, vector<2x128xf32> -> vector<2x128xf32>
    %56 = arith.addf %54, %55 : vector<2x128xf32>
    %57 = arith.mulf %56, %18 : vector<2x128xf32>
    %58 = math.tanh %57 : vector<2x128xf32>
    %59 = arith.mulf %18, %58 : vector<2x128xf32>
    %60 = arith.addf %59, %21 : vector<2x128xf32>
    %61 = vector.extract_strided_slice %60 {offsets = [0, 0], sizes = [2, 32], strides = [1, 1]} : vector<2x128xf32> to vector<2x32xf32>
    %62 = vector.extract_strided_slice %60 {offsets = [0, 32], sizes = [2, 32], strides = [1, 1]} : vector<2x128xf32> to vector<2x32xf32>
    %63 = vector.extract_strided_slice %60 {offsets = [0, 64], sizes = [2, 32], strides = [1, 1]} : vector<2x128xf32> to vector<2x32xf32>
    %64 = vector.extract_strided_slice %60 {offsets = [0, 96], sizes = [2, 32], strides = [1, 1]} : vector<2x128xf32> to vector<2x32xf32>
    %65 = arith.mulf %62, %49 : vector<2x32xf32>
    %66 = arith.mulf %61, %63 : vector<2x32xf32>
    %67 = arith.addf %65, %66 : vector<2x32xf32>
    %68 = math.tanh %67 : vector<2x32xf32>
    %69 = arith.mulf %64, %68 : vector<2x32xf32>
    %c3_i32 = arith.constant 3 : i32
    %70 = arith.index_cast %c3_i32 : i32 to index
    %c0_24 = arith.constant 0 : index
    %c0_25 = arith.constant 0 : index
    %71 = vector.load %arg8[%70, %c0_24, %c0_25] : memref<8x2x128xf32, #tpu.memory_space<vmem>>, vector<1x2x128xf32>
    %72 = vector.shape_cast %71 : vector<1x2x128xf32> to vector<2x128xf32>
    %cst_26 = arith.constant dense<0.000000e+00> : vector<2x128xf32>
    %73 = tpu.matmul %69, %9, %cst_26 {dimension_numbers = #tpu.dot_dimension_numbers<[1], [0], [0], [1], [0, 0, 1, 1], [], []>} : vector<2x32xf32>, vector<32x128xf32>, vector<2x128xf32> -> vector<2x128xf32>
    %74 = arith.addf %72, %73 : vector<2x128xf32>
    %75 = arith.mulf %74, %18 : vector<2x128xf32>
    %76 = math.tanh %75 : vector<2x128xf32>
    %77 = arith.mulf %18, %76 : vector<2x128xf32>
    %78 = arith.addf %77, %21 : vector<2x128xf32>
    %79 = vector.extract_strided_slice %78 {offsets = [0, 0], sizes = [2, 32], strides = [1, 1]} : vector<2x128xf32> to vector<2x32xf32>
    %80 = vector.extract_strided_slice %78 {offsets = [0, 32], sizes = [2, 32], strides = [1, 1]} : vector<2x128xf32> to vector<2x32xf32>
    %81 = vector.extract_strided_slice %78 {offsets = [0, 64], sizes = [2, 32], strides = [1, 1]} : vector<2x128xf32> to vector<2x32xf32>
    %82 = vector.extract_strided_slice %78 {offsets = [0, 96], sizes = [2, 32], strides = [1, 1]} : vector<2x128xf32> to vector<2x32xf32>
    %83 = arith.mulf %80, %67 : vector<2x32xf32>
    %84 = arith.mulf %79, %81 : vector<2x32xf32>
    %85 = arith.addf %83, %84 : vector<2x32xf32>
    %86 = math.tanh %85 : vector<2x32xf32>
    %87 = arith.mulf %82, %86 : vector<2x32xf32>
    %c4_i32 = arith.constant 4 : i32
    %88 = arith.index_cast %c4_i32 : i32 to index
    %c0_27 = arith.constant 0 : index
    %c0_28 = arith.constant 0 : index
    %89 = vector.load %arg8[%88, %c0_27, %c0_28] : memref<8x2x128xf32, #tpu.memory_space<vmem>>, vector<1x2x128xf32>
    %90 = vector.shape_cast %89 : vector<1x2x128xf32> to vector<2x128xf32>
    %cst_29 = arith.constant dense<0.000000e+00> : vector<2x128xf32>
    %91 = tpu.matmul %87, %9, %cst_29 {dimension_numbers = #tpu.dot_dimension_numbers<[1], [0], [0], [1], [0, 0, 1, 1], [], []>} : vector<2x32xf32>, vector<32x128xf32>, vector<2x128xf32> -> vector<2x128xf32>
    %92 = arith.addf %90, %91 : vector<2x128xf32>
    %93 = arith.mulf %92, %18 : vector<2x128xf32>
    %94 = math.tanh %93 : vector<2x128xf32>
    %95 = arith.mulf %18, %94 : vector<2x128xf32>
    %96 = arith.addf %95, %21 : vector<2x128xf32>
    %97 = vector.extract_strided_slice %96 {offsets = [0, 0], sizes = [2, 32], strides = [1, 1]} : vector<2x128xf32> to vector<2x32xf32>
    %98 = vector.extract_strided_slice %96 {offsets = [0, 32], sizes = [2, 32], strides = [1, 1]} : vector<2x128xf32> to vector<2x32xf32>
    %99 = vector.extract_strided_slice %96 {offsets = [0, 64], sizes = [2, 32], strides = [1, 1]} : vector<2x128xf32> to vector<2x32xf32>
    %100 = vector.extract_strided_slice %96 {offsets = [0, 96], sizes = [2, 32], strides = [1, 1]} : vector<2x128xf32> to vector<2x32xf32>
    %101 = arith.mulf %98, %85 : vector<2x32xf32>
    %102 = arith.mulf %97, %99 : vector<2x32xf32>
    %103 = arith.addf %101, %102 : vector<2x32xf32>
    %104 = math.tanh %103 : vector<2x32xf32>
    %105 = arith.mulf %100, %104 : vector<2x32xf32>
    %c5_i32 = arith.constant 5 : i32
    %106 = arith.index_cast %c5_i32 : i32 to index
    %c0_30 = arith.constant 0 : index
    %c0_31 = arith.constant 0 : index
    %107 = vector.load %arg8[%106, %c0_30, %c0_31] : memref<8x2x128xf32, #tpu.memory_space<vmem>>, vector<1x2x128xf32>
    %108 = vector.shape_cast %107 : vector<1x2x128xf32> to vector<2x128xf32>
    %cst_32 = arith.constant dense<0.000000e+00> : vector<2x128xf32>
    %109 = tpu.matmul %105, %9, %cst_32 {dimension_numbers = #tpu.dot_dimension_numbers<[1], [0], [0], [1], [0, 0, 1, 1], [], []>} : vector<2x32xf32>, vector<32x128xf32>, vector<2x128xf32> -> vector<2x128xf32>
    %110 = arith.addf %108, %109 : vector<2x128xf32>
    %111 = arith.mulf %110, %18 : vector<2x128xf32>
    %112 = math.tanh %111 : vector<2x128xf32>
    %113 = arith.mulf %18, %112 : vector<2x128xf32>
    %114 = arith.addf %113, %21 : vector<2x128xf32>
    %115 = vector.extract_strided_slice %114 {offsets = [0, 0], sizes = [2, 32], strides = [1, 1]} : vector<2x128xf32> to vector<2x32xf32>
    %116 = vector.extract_strided_slice %114 {offsets = [0, 32], sizes = [2, 32], strides = [1, 1]} : vector<2x128xf32> to vector<2x32xf32>
    %117 = vector.extract_strided_slice %114 {offsets = [0, 64], sizes = [2, 32], strides = [1, 1]} : vector<2x128xf32> to vector<2x32xf32>
    %118 = vector.extract_strided_slice %114 {offsets = [0, 96], sizes = [2, 32], strides = [1, 1]} : vector<2x128xf32> to vector<2x32xf32>
    %119 = arith.mulf %116, %103 : vector<2x32xf32>
    %120 = arith.mulf %115, %117 : vector<2x32xf32>
    %121 = arith.addf %119, %120 : vector<2x32xf32>
    %122 = math.tanh %121 : vector<2x32xf32>
    %123 = arith.mulf %118, %122 : vector<2x32xf32>
    %c6_i32 = arith.constant 6 : i32
    %124 = arith.index_cast %c6_i32 : i32 to index
    %c0_33 = arith.constant 0 : index
    %c0_34 = arith.constant 0 : index
    %125 = vector.load %arg8[%124, %c0_33, %c0_34] : memref<8x2x128xf32, #tpu.memory_space<vmem>>, vector<1x2x128xf32>
    %126 = vector.shape_cast %125 : vector<1x2x128xf32> to vector<2x128xf32>
    %cst_35 = arith.constant dense<0.000000e+00> : vector<2x128xf32>
    %127 = tpu.matmul %123, %9, %cst_35 {dimension_numbers = #tpu.dot_dimension_numbers<[1], [0], [0], [1], [0, 0, 1, 1], [], []>} : vector<2x32xf32>, vector<32x128xf32>, vector<2x128xf32> -> vector<2x128xf32>
    %128 = arith.addf %126, %127 : vector<2x128xf32>
    %129 = arith.mulf %128, %18 : vector<2x128xf32>
    %130 = math.tanh %129 : vector<2x128xf32>
    %131 = arith.mulf %18, %130 : vector<2x128xf32>
    %132 = arith.addf %131, %21 : vector<2x128xf32>
    %133 = vector.extract_strided_slice %132 {offsets = [0, 0], sizes = [2, 32], strides = [1, 1]} : vector<2x128xf32> to vector<2x32xf32>
    %134 = vector.extract_strided_slice %132 {offsets = [0, 32], sizes = [2, 32], strides = [1, 1]} : vector<2x128xf32> to vector<2x32xf32>
    %135 = vector.extract_strided_slice %132 {offsets = [0, 64], sizes = [2, 32], strides = [1, 1]} : vector<2x128xf32> to vector<2x32xf32>
    %136 = vector.extract_strided_slice %132 {offsets = [0, 96], sizes = [2, 32], strides = [1, 1]} : vector<2x128xf32> to vector<2x32xf32>
    %137 = arith.mulf %134, %121 : vector<2x32xf32>
    %138 = arith.mulf %133, %135 : vector<2x32xf32>
    %139 = arith.addf %137, %138 : vector<2x32xf32>
    %140 = math.tanh %139 : vector<2x32xf32>
    %141 = arith.mulf %136, %140 : vector<2x32xf32>
    %c7_i32 = arith.constant 7 : i32
    %142 = arith.index_cast %c7_i32 : i32 to index
    %c0_36 = arith.constant 0 : index
    %c0_37 = arith.constant 0 : index
    %143 = vector.load %arg8[%142, %c0_36, %c0_37] : memref<8x2x128xf32, #tpu.memory_space<vmem>>, vector<1x2x128xf32>
    %144 = vector.shape_cast %143 : vector<1x2x128xf32> to vector<2x128xf32>
    %cst_38 = arith.constant dense<0.000000e+00> : vector<2x128xf32>
    %145 = tpu.matmul %141, %9, %cst_38 {dimension_numbers = #tpu.dot_dimension_numbers<[1], [0], [0], [1], [0, 0, 1, 1], [], []>} : vector<2x32xf32>, vector<32x128xf32>, vector<2x128xf32> -> vector<2x128xf32>
    %146 = arith.addf %144, %145 : vector<2x128xf32>
    %147 = arith.mulf %146, %18 : vector<2x128xf32>
    %148 = math.tanh %147 : vector<2x128xf32>
    %149 = arith.mulf %18, %148 : vector<2x128xf32>
    %150 = arith.addf %149, %21 : vector<2x128xf32>
    %151 = vector.extract_strided_slice %150 {offsets = [0, 0], sizes = [2, 32], strides = [1, 1]} : vector<2x128xf32> to vector<2x32xf32>
    %152 = vector.extract_strided_slice %150 {offsets = [0, 32], sizes = [2, 32], strides = [1, 1]} : vector<2x128xf32> to vector<2x32xf32>
    %153 = vector.extract_strided_slice %150 {offsets = [0, 64], sizes = [2, 32], strides = [1, 1]} : vector<2x128xf32> to vector<2x32xf32>
    %154 = vector.extract_strided_slice %150 {offsets = [0, 96], sizes = [2, 32], strides = [1, 1]} : vector<2x128xf32> to vector<2x32xf32>
    %155 = arith.mulf %152, %139 : vector<2x32xf32>
    %156 = arith.mulf %151, %153 : vector<2x32xf32>
    %157 = arith.addf %155, %156 : vector<2x32xf32>
    %158 = math.tanh %157 : vector<2x32xf32>
    %159 = arith.mulf %154, %158 : vector<2x32xf32>
    %c7_i32_39 = arith.constant 7 : i32
    %c0_40 = arith.constant 0 : index
    %c0_41 = arith.constant 0 : index
    %160 = vector.load %arg5[%c0_40, %c0_41] : memref<32x1xf32, #tpu.memory_space<vmem>>, vector<32x1xf32>
    %cst_42 = arith.constant dense<0.000000e+00> : vector<2x1xf32>
    %161 = tpu.matmul %159, %160, %cst_42 {dimension_numbers = #tpu.dot_dimension_numbers<[1], [0], [0], [1], [0, 0, 1, 1], [], []>} : vector<2x32xf32>, vector<32x1xf32>, vector<2x1xf32> -> vector<2x1xf32>
    %c0_43 = arith.constant 0 : index
    %c0_44 = arith.constant 0 : index
    %162 = vector.load %arg6[%c0_43, %c0_44] : memref<1x1xf32, #tpu.memory_space<vmem>>, vector<1x1xf32>
    %163 = vector.broadcast %162 : vector<1x1xf32> to vector<2x1xf32>
    %164 = arith.addf %161, %163 : vector<2x1xf32>
    %c0_45 = arith.constant 0 : index
    %c0_46 = arith.constant 0 : index
    %165 = vector.load %arg7[%c0_45, %c0_46] : memref<2x1xf32, #tpu.memory_space<vmem>>, vector<2x1xf32>
    tpu.vector_store %arg7[%c0_45, %c0_46], %164 {strides = array<i32>} : memref<2x1xf32, #tpu.memory_space<vmem>>, vector<2x1xf32>,
    return
  }
  func.func @transform_0(%arg0: i32) -> (i32, i32, i32) {
    %c0_i32 = arith.constant 0 : i32
    %c0_i32_0 = arith.constant 0 : i32
    %c0_i32_1 = arith.constant 0 : i32
    return %c0_i32, %arg0, %c0_i32_0 : i32, i32, i32
  }
  func.func @transform_1(%arg0: i32) -> (i32, i32) {
    %c0_i32 = arith.constant 0 : i32
    %c0_i32_0 = arith.constant 0 : i32
    %c0_i32_1 = arith.constant 0 : i32
    return %c0_i32, %c0_i32_0 : i32, i32
  }
  func.func @transform_2(%arg0: i32) -> (i32, i32) {
    %c0_i32 = arith.constant 0 : i32
    %c0_i32_0 = arith.constant 0 : i32
    %c0_i32_1 = arith.constant 0 : i32
    return %c0_i32, %c0_i32_0 : i32, i32
  }
  func.func @transform_3(%arg0: i32) -> (i32, i32) {
    %c0_i32 = arith.constant 0 : i32
    %c0_i32_0 = arith.constant 0 : i32
    %c0_i32_1 = arith.constant 0 : i32
    return %c0_i32, %c0_i32_0 : i32, i32
  }
  func.func @transform_4(%arg0: i32) -> (i32, i32) {
    %c0_i32 = arith.constant 0 : i32
    %c0_i32_0 = arith.constant 0 : i32
    %c0_i32_1 = arith.constant 0 : i32
    return %c0_i32, %c0_i32_0 : i32, i32
  }
  func.func @transform_5(%arg0: i32) -> (i32, i32) {
    %c0_i32 = arith.constant 0 : i32
    %c0_i32_0 = arith.constant 0 : i32
    %c0_i32_1 = arith.constant 0 : i32
    return %c0_i32, %c0_i32_0 : i32, i32
  }
  func.func @transform_6(%arg0: i32) -> (i32, i32) {
    %c0_i32 = arith.constant 0 : i32
    %c0_i32_0 = arith.constant 0 : i32
    return %arg0, %c0_i32 : i32, i32
  }
}

</mosaic_0001>

<llo_original>
// kernel: tpu_custom_call.1
$region0: #{tpu_custom_call.1}
  #allocation0 [shape = 'u32[]', space=smem, size = 0x4, offset = 0x4, fixed_abs, tag = 'smem constant byte address 0x4 - core index']
  #allocation1 [shape = 'u32[144,128]{1,0:T(1,128)}', space=vmem, size = 0x12000, scoped, tag = 'internal scratch']
  #allocation2 [shape = 'f32[8,2,128]{2,1,0:T(2,128)}', space=vmem, size = 0x2000, scoped, tag = 'scratch operand']
  #allocation3 [shape = 'f32[1,1]{1,0:T(1,128)S(1)}', space=vmem, size = 0x200, scoped, tag = 'scoped memory for tpu_custom_call.1']
  %s0 = inlined_call_operand.vmem [shape: f32[8,2,4], index: 0, kind: input, shape index: {}]
  %s1 = inlined_call_operand.vmem [shape: f32[4,128], index: 1, kind: input, shape index: {}]
  %s2 = inlined_call_operand.vmem [shape: f32[32,128], index: 2, kind: input, shape index: {}]
  %s3 = inlined_call_operand.vmem [shape: f32[1,128], index: 3, kind: input, shape index: {}]
  %s4 = inlined_call_operand.vmem [shape: f32[32,1], index: 4, kind: input, shape index: {}]
  %s5 = inlined_call_operand.<no memory space> [shape: f32[1,1], index: 5, kind: input, shape index: {}]
  %s6 = inlined_call_operand.vmem [shape: f32[2,1], index: 6, kind: output, shape index: {}]
  %s7 = sld [smem:[#allocation0]]
  $region34: #{tpu_custom_call.1} parent=0
    _
  %s9 = ssub.s32 1, %s7
  %s10 = scalar_select 0, %s9, %s7
  %v11 = vstv %s5
  %12 = vst [vmem:[#allocation3] sm:$0x1] %v11
  // Predicated region
  $region2: #{tpu_custom_call.1} parent=0 // pred_check
    _
  $region3: #{tpu_custom_call.1} parent=0 // pred_check_branch
    %14 = sbr.rel (0) target = $region5
  $region4: #{tpu_custom_call.1} parent=0 // pred_region
    _
  $region5: #{tpu_custom_call.1} parent=0 // pred_fallthru
    _
  // Predicated region
  $region6: #{tpu_custom_call.1} parent=0 // pred_check
    _
  $region7: #{tpu_custom_call.1} parent=0 // pred_check_branch
    %16 = sbr.rel (0) target = $region9
  $region8: #{tpu_custom_call.1} parent=0 // pred_region
    _
  $region9: #{tpu_custom_call.1} parent=0 // pred_fallthru
    _
  // Predicated region
  $region10: #{tpu_custom_call.1} parent=0 // pred_check
    _
  $region11: #{tpu_custom_call.1} parent=0 // pred_check_branch
    %18 = sbr.rel (0) target = $region13
  $region12: #{tpu_custom_call.1} parent=0 // pred_region
    _
  $region13: #{tpu_custom_call.1} parent=0 // pred_fallthru
    _
  // Predicated region
  $region14: #{tpu_custom_call.1} parent=0 // pred_check
    _
  $region15: #{tpu_custom_call.1} parent=0 // pred_check_branch
    %20 = sbr.rel (0) target = $region17
  $region16: #{tpu_custom_call.1} parent=0 // pred_region
    _
  $region17: #{tpu_custom_call.1} parent=0 // pred_fallthru
    _
  // Predicated region
  $region18: #{tpu_custom_call.1} parent=0 // pred_check
    _
  $region19: #{tpu_custom_call.1} parent=0 // pred_check_branch
    %22 = sbr.rel (0) target = $region21
  $region20: #{tpu_custom_call.1} parent=0 // pred_region
    _
  $region21: #{tpu_custom_call.1} parent=0 // pred_fallthru
    _
  // Predicated region
  $region22: #{tpu_custom_call.1} parent=0 // pred_check
    _
  $region23: #{tpu_custom_call.1} parent=0 // pred_check_branch
    %24 = sbr.rel (0) target = $region25
  $region24: #{tpu_custom_call.1} parent=0 // pred_region
    _
  $region25: #{tpu_custom_call.1} parent=0 // pred_fallthru
    _
  %v25 = vld [vmem:[%s0] sm:$0x3]
  %v26 = vld [vmem:[%s0 + $0x2] sm:$0x3]
  %v27 = vld [vmem:[%s0 + $0x4] sm:$0x3]
  %v28 = vld [vmem:[%s0 + $0x6] sm:$0x3]
  %v29 = vld [vmem:[%s0 + $0x8] sm:$0x3]
  %v30 = vld [vmem:[%s0 + $0xa] sm:$0x3]
  %v31 = vld [vmem:[%s0 + $0xc] sm:$0x3]
  %v32 = vld [vmem:[%s0 + $0xe] sm:$0x3]
  %v33 = vld [vmem:[%s1] sm:$0xf]
  %v34 = vld [vmem:[%s3] sm:$0x1]
  %v36 = vlaneseq
  %v37 = vshrl.u32 %v36, 7
  %v38 = vsub.s32 0, %v37
  %v39 = vrot.slane %v34, %v38
  %v49 = vcombine.low %v25, %v26
  %v50 = vcombine.low %v27, %v28
  %v52 = vunpack.c.l.s4 1983009808
  %v53 = vunpack.c.0.s8 %v52
  %v54 = vlaneseq
  %v55 = vshrl.u32 %v54, 7
  %v56 = vsub.s32 %v53, %v55
  %v57 = vrot.slane %v49, %v56
  %v59 = vunpack.c.l.s4 1983009808
  %v60 = vunpack.c.0.s8 %v59
  %v61 = vlaneseq
  %v62 = vshrl.u32 %v61, 7
  %v63 = vsub.s32 %v60, %v62
  %v64 = vrot.slane %v50, %v63
  %v65 = vcombine.low %v57, %v64
  %v66 = vcombine.low %v29, %v30
  %v67 = vcombine.low %v31, %v32
  %v69 = vunpack.c.l.s4 1983009808
  %v70 = vunpack.c.0.s8 %v69
  %v71 = vlaneseq
  %v72 = vshrl.u32 %v71, 7
  %v73 = vsub.s32 %v70, %v72
  %v74 = vrot.slane %v66, %v73
  %v76 = vunpack.c.l.s4 1983009808
  %v77 = vunpack.c.0.s8 %v76
  %v78 = vlaneseq
  %v79 = vshrl.u32 %v78, 7
  %v80 = vsub.s32 %v77, %v79
  %v81 = vrot.slane %v67, %v80
  %v82 = vcombine.low %v74, %v81
  %vm83 = vcmask 31744
  %v84 = vsel %vm83, %v65, 0
  %v86 = vsel %vm83, %v82, 0
  %vm88 = vcmask 1043456
  %v90 = vsel %vm88, %v33, 0
  %92 = vmatprep.subr.mxu0 0.0
  %93 = vmatpush1.msra.mxu0 %v90
  %94 = vmatprep.subr.mxu0 0.0
  %95 = vmatpush1.msra.mxu0 0.0
  %96 = vmatprep.subr.mxu0 0.0
  %97 = vmatpush1.msra.mxu0 0.0
  %98 = vmatprep.subr.mxu0 0.0
  %99 = vmatpush1.msra.mxu0 0.0
  %100 = vmatprep.subr.mxu0 0.0
  %101 = vmatpush1.msra.mxu0 0.0
  %102 = vmatprep.subr.mxu0 0.0
  %103 = vmatpush1.msra.mxu0 0.0
  %104 = vmatprep.subr.mxu0 0.0
  %105 = vmatpush1.msra.mxu0 0.0
  %106 = vmatprep.subr.mxu0 0.0
  %107 = vmatpush1.msra.mxu0 0.0
  %108 = vmatprep.subr.mxu0 0.0
  %109 = vmatpush1.msra.mxu0 0.0
  %110 = vmatprep.subr.mxu0 0.0
  %111 = vmatpush1.msra.mxu0 0.0
  %112 = vmatprep.subr.mxu0 0.0
  %113 = vmatpush1.msra.mxu0 0.0
  %114 = vmatprep.subr.mxu0 0.0
  %115 = vmatpush1.msra.mxu0 0.0
  %116 = vmatprep.subr.mxu0 0.0
  %117 = vmatpush1.msra.mxu0 0.0
  %118 = vmatprep.subr.mxu0 0.0
  %119 = vmatpush1.msra.mxu0 0.0
  %120 = vmatprep.subr.mxu0 0.0
  %121 = vmatpush1.msra.mxu0 0.0
  %122 = vmatprep.subr.mxu0 0.0
  %123 = vmatpush1.msra.mxu0 0.0
  %124 = vmatprep.subr.mxu0 0.0
  %125 = vmatpush1.msra.mxu0 0.0
  %126 = vmatprep.subr.mxu0 0.0
  %127 = vmatpush1.msra.mxu0 0.0
  %128 = vmatprep.subr.mxu0 0.0
  %129 = vmatpush1.msra.mxu0 0.0
  %130 = vmatprep.subr.mxu0 0.0
  %131 = vmatpush1.msra.mxu0 0.0
  %132 = vmatprep.subr.mxu0 0.0
  %133 = vmatpush1.msra.mxu0 0.0
  %134 = vmatprep.subr.mxu0 0.0
  %135 = vmatpush1.msra.mxu0 0.0
  %136 = vmatprep.subr.mxu0 0.0
  %137 = vmatpush1.msra.mxu0 0.0
  %138 = vmatprep.subr.mxu0 0.0
  %139 = vmatpush1.msra.mxu0 0.0
  %140 = vmatprep.subr.mxu0 0.0
  %141 = vmatpush1.msra.mxu0 0.0
  %142 = vmatprep.subr.mxu0 0.0
  %143 = vmatpush1.msra.mxu0 0.0
  %144 = vmatprep.subr.mxu0 0.0
  %145 = vmatpush1.msra.mxu0 0.0
  %146 = vmatprep.subr.mxu0 0.0
  %147 = vmatpush1.msra.mxu0 0.0
  %148 = vmatprep.subr.mxu0 0.0
  %149 = vmatpush1.msra.mxu0 0.0
  %150 = vmatprep.subr.mxu0 0.0
  %151 = vmatpush1.msra.mxu0 0.0
  %152 = vmatprep.subr.mxu0 0.0
  %153 = vmatpush1.msra.mxu0 0.0
  %154 = vmatprep.subr.mxu0 0.0
  %155 = vmatpush1.msra.mxu0 0.0
  %156 = vmatprep.mubr.f32.mxu0 0.0
  %157 = vmatmul.mubr.f32.gmra.mrb[0].mxu0 %v84
  %v158 = vpop.f32.mrb[0].mxu0
  %v159 = vadd.f32 %v39, %v158
  %v160 = vpop.f32.mrb[0].mxu0
  %161 = vmatprep.mubr.f32.mxu0 0.0
  %162 = vmatmul.mubr.f32.gmra.mrb[0].mxu0 %v86
  %v163 = vpop.f32.mrb[0].mxu0
  %v164 = vadd.f32 %v39, %v163
  %v165 = vpop.f32.mrb[0].mxu0
  %166 = vdwg.mxu0
  %v169 = vcombine.high %v159, %v159
  %v171 = vunpack.c.l.s4 1983009808
  %v172 = vunpack.c.0.s8 %v171
  %v173 = vlaneseq
  %v174 = vshrl.u32 %v173, 7
  %v175 = vsub.s32 %v172, %v174
  %v176 = vrot.slane %v159, %v175
  %v178 = vunpack.c.l.s4 1983009808
  %v179 = vunpack.c.0.s8 %v178
  %v180 = vlaneseq
  %v181 = vshrl.u32 %v180, 7
  %v182 = vsub.s32 %v179, %v181
  %v183 = vrot.slane %v169, %v182
  %v184 = vcombine.high %v176, %v176
  %v185 = vcombine.high %v183, %v183
  %v186 = vcombine.high %v164, %v164
  %v188 = vunpack.c.l.s4 1983009808
  %v189 = vunpack.c.0.s8 %v188
  %v190 = vlaneseq
  %v191 = vshrl.u32 %v190, 7
  %v192 = vsub.s32 %v189, %v191
  %v193 = vrot.slane %v164, %v192
  %v195 = vunpack.c.l.s4 1983009808
  %v196 = vunpack.c.0.s8 %v195
  %v197 = vlaneseq
  %v198 = vshrl.u32 %v197, 7
  %v199 = vsub.s32 %v196, %v198
  %v200 = vrot.slane %v186, %v199
  %v201 = vcombine.high %v193, %v193
  %v202 = vcombine.high %v200, %v200
  %211 = vst [vmem:[#allocation2] sm:$0x3] %v176
  %212 = vst [vmem:[#allocation2 + $0x2] sm:$0x3] %v184
  %213 = vst [vmem:[#allocation2 + $0x4] sm:$0x3] %v183
  %214 = vst [vmem:[#allocation2 + $0x6] sm:$0x3] %v185
  %215 = vst [vmem:[#allocation2 + $0x8] sm:$0x3] %v193
  %216 = vst [vmem:[#allocation2 + $0xa] sm:$0x3] %v201
  %217 = vst [vmem:[#allocation2 + $0xc] sm:$0x3] %v200
  %218 = vst [vmem:[#allocation2 + $0xe] sm:$0x3] %v202
  %v219 = vld [vmem:[%s2] sm:$0xff]
  %v220 = vld [vmem:[%s2 + $0x8] sm:$0xff]
  %v221 = vld [vmem:[%s2 + $0x10] sm:$0xff]
  %v222 = vld [vmem:[%s2 + $0x18] sm:$0xff]
  %v223 = vlaneseq
  %v224 = vand.u32 %v223, 127
  %vm225 = vcmp.ge.s32.totalorder %v224, 64
  %vm226 = vcmp.lt.s32.totalorder %v224, 96
  %vm227 = vmand %vm225, %vm226
  %v228 = vsel %vm227, 1.0, 0.5
  %v229 = vsel %vm227, 0.0, 0.5
  %v230 = vld [vmem:[#allocation2] sm:$0x3]
  %v231 = vmul.f32 %v230, %v228
  %v232 = vtanh.pop %v231
  %v233 = vmul.f32 %v228, %v232
  %v234 = vadd.f32 %v233, %v229
  %236 = vrot.lane.b32.xlu0 %v234, 64
  %v237 = vpop.permute.xlu0 %236
  %v239 = vmul.f32 %v234, %v237
  %v240 = vtanh.pop %v239
  %242 = vrot.lane.b32.xlu0 %v240, 96
  %v243 = vpop.permute.xlu0 %242
  %v245 = vmul.f32 %v234, %v243
  %s246 = scalar_lea.vmem [#allocation2], 2
  %v247 = vld [vmem:[%s246] sm:$0x3]
  %249 = vrot.lane.b32.xlu0 %v245, 32
  %v250 = vpop.permute.xlu0 %249
  %vm251 = vcmask 261120
  %v252 = vsel %vm251, %v250, 0
  %254 = vmatprep.subr.mxu0 0.0
  %255 = vmatpush1.msra.mxu0 %v219
  %256 = vmatprep.subr.mxu0 0.0
  %257 = vmatpush1.msra.mxu0 %v220
  %258 = vmatprep.subr.mxu0 0.0
  %259 = vmatpush1.msra.mxu0 %v221
  %260 = vmatprep.subr.mxu0 0.0
  %261 = vmatpush1.msra.mxu0 %v222
  %262 = vmatprep.subr.mxu0 0.0
  %263 = vmatpush1.msra.mxu0 0.0
  %264 = vmatprep.subr.mxu0 0.0
  %265 = vmatpush1.msra.mxu0 0.0
  %266 = vmatprep.subr.mxu0 0.0
  %267 = vmatpush1.msra.mxu0 0.0
  %268 = vmatprep.subr.mxu0 0.0
  %269 = vmatpush1.msra.mxu0 0.0
  %270 = vmatprep.subr.mxu0 0.0
  %271 = vmatpush1.msra.mxu0 0.0
  %272 = vmatprep.subr.mxu0 0.0
  %273 = vmatpush1.msra.mxu0 0.0
  %274 = vmatprep.subr.mxu0 0.0
  %275 = vmatpush1.msra.mxu0 0.0
  %276 = vmatprep.subr.mxu0 0.0
  %277 = vmatpush1.msra.mxu0 0.0
  %278 = vmatprep.subr.mxu0 0.0
  %279 = vmatpush1.msra.mxu0 0.0
  %280 = vmatprep.subr.mxu0 0.0
  %281 = vmatpush1.msra.mxu0 0.0
  %282 = vmatprep.subr.mxu0 0.0
  %283 = vmatpush1.msra.mxu0 0.0
  %284 = vmatprep.subr.mxu0 0.0
  %285 = vmatpush1.msra.mxu0 0.0
  %286 = vmatprep.subr.mxu0 0.0
  %287 = vmatpush1.msra.mxu0 0.0
  %288 = vmatprep.subr.mxu0 0.0
  %289 = vmatpush1.msra.mxu0 0.0
  %290 = vmatprep.subr.mxu0 0.0
  %291 = vmatpush1.msra.mxu0 0.0
  %292 = vmatprep.subr.mxu0 0.0
  %293 = vmatpush1.msra.mxu0 0.0
  %294 = vmatprep.subr.mxu0 0.0
  %295 = vmatpush1.msra.mxu0 0.0
  %296 = vmatprep.subr.mxu0 0.0
  %297 = vmatpush1.msra.mxu0 0.0
  %298 = vmatprep.subr.mxu0 0.0
  %299 = vmatpush1.msra.mxu0 0.0
  %300 = vmatprep.subr.mxu0 0.0
  %301 = vmatpush1.msra.mxu0 0.0
  %302 = vmatprep.subr.mxu0 0.0
  %303 = vmatpush1.msra.mxu0 0.0
  %304 = vmatprep.subr.mxu0 0.0
  %305 = vmatpush1.msra.mxu0 0.0
  %306 = vmatprep.subr.mxu0 0.0
  %307 = vmatpush1.msra.mxu0 0.0
  %308 = vmatprep.subr.mxu0 0.0
  %309 = vmatpush1.msra.mxu0 0.0
  %310 = vmatprep.subr.mxu0 0.0
  %311 = vmatpush1.msra.mxu0 0.0
  %312 = vmatprep.subr.mxu0 0.0
  %313 = vmatpush1.msra.mxu0 0.0
  %314 = vmatprep.subr.mxu0 0.0
  %315 = vmatpush1.msra.mxu0 0.0
  %316 = vmatprep.subr.mxu0 0.0
  %317 = vmatpush1.msra.mxu0 0.0
  %318 = vmatprep.mubr.f32.mxu0 0.0
  %319 = vmatmul.mubr.f32.gmra.mrb[0].mxu0 %v252
  %v320 = vpop.f32.mrb[0].mxu0
  %v321 = vadd.f32 0.0, %v320
  %v322 = vpop.f32.mrb[0].mxu0
  %323 = vdwg.mxu0
  %v324 = vadd.f32 %v247, %v321
  %v325 = vmul.f32 %v324, %v228
  %v326 = vtanh.pop %v325
  %v327 = vmul.f32 %v228, %v326
  %v328 = vadd.f32 %v327, %v229
  %330 = vrot.lane.b32.xlu0 %v239, 32
  %v331 = vpop.permute.xlu0 %330
  %v333 = vmul.f32 %v328, %v331
  %335 = vrot.lane.b32.xlu0 %v328, 64
  %v336 = vpop.permute.xlu0 %335
  %v338 = vmul.f32 %v328, %v336
  %340 = vrot.lane.b32.xlu0 %v338, 32
  %v341 = vpop.permute.xlu0 %340
  %v343 = vadd.f32 %v333, %v341
  %v344 = vtanh.pop %v343
  %346 = vrot.lane.b32.xlu0 %v344, 64
  %v347 = vpop.permute.xlu0 %346
  %v349 = vmul.f32 %v328, %v347
  %s350 = scalar_lea.vmem [#allocation2], 4
  %v351 = vld [vmem:[%s350] sm:$0x3]
  %353 = vrot.lane.b32.xlu0 %v349, 32
  %v354 = vpop.permute.xlu0 %353
  %v355 = vsel %vm251, %v354, 0
  %357 = vmatprep.subr.mxu0 0.0
  %358 = vmatpush1.msra.mxu0 %v219
  %359 = vmatprep.subr.mxu0 0.0
  %360 = vmatpush1.msra.mxu0 %v220
  %361 = vmatprep.subr.mxu0 0.0
  %362 = vmatpush1.msra.mxu0 %v221
  %363 = vmatprep.subr.mxu0 0.0
  %364 = vmatpush1.msra.mxu0 %v222
  %365 = vmatprep.subr.mxu0 0.0
  %366 = vmatpush1.msra.mxu0 0.0
  %367 = vmatprep.subr.mxu0 0.0
  %368 = vmatpush1.msra.mxu0 0.0
  %369 = vmatprep.subr.mxu0 0.0
  %370 = vmatpush1.msra.mxu0 0.0
  %371 = vmatprep.subr.mxu0 0.0
  %372 = vmatpush1.msra.mxu0 0.0
  %373 = vmatprep.subr.mxu0 0.0
  %374 = vmatpush1.msra.mxu0 0.0
  %375 = vmatprep.subr.mxu0 0.0
  %376 = vmatpush1.msra.mxu0 0.0
  %377 = vmatprep.subr.mxu0 0.0
  %378 = vmatpush1.msra.mxu0 0.0
  %379 = vmatprep.subr.mxu0 0.0
  %380 = vmatpush1.msra.mxu0 0.0
  %381 = vmatprep.subr.mxu0 0.0
  %382 = vmatpush1.msra.mxu0 0.0
  %383 = vmatprep.subr.mxu0 0.0
  %384 = vmatpush1.msra.mxu0 0.0
  %385 = vmatprep.subr.mxu0 0.0
  %386 = vmatpush1.msra.mxu0 0.0
  %387 = vmatprep.subr.mxu0 0.0
  %388 = vmatpush1.msra.mxu0 0.0
  %389 = vmatprep.subr.mxu0 0.0
  %390 = vmatpush1.msra.mxu0 0.0
  %391 = vmatprep.subr.mxu0 0.0
  %392 = vmatpush1.msra.mxu0 0.0
  %393 = vmatprep.subr.mxu0 0.0
  %394 = vmatpush1.msra.mxu0 0.0
  %395 = vmatprep.subr.mxu0 0.0
  %396 = vmatpush1.msra.mxu0 0.0
  %397 = vmatprep.subr.mxu0 0.0
  %398 = vmatpush1.msra.mxu0 0.0
  %399 = vmatprep.subr.mxu0 0.0
  %400 = vmatpush1.msra.mxu0 0.0
  %401 = vmatprep.subr.mxu0 0.0
  %402 = vmatpush1.msra.mxu0 0.0
  %403 = vmatprep.subr.mxu0 0.0
  %404 = vmatpush1.msra.mxu0 0.0
  %405 = vmatprep.subr.mxu0 0.0
  %406 = vmatpush1.msra.mxu0 0.0
  %407 = vmatprep.subr.mxu0 0.0
  %408 = vmatpush1.msra.mxu0 0.0
  %409 = vmatprep.subr.mxu0 0.0
  %410 = vmatpush1.msra.mxu0 0.0
  %411 = vmatprep.subr.mxu0 0.0
  %412 = vmatpush1.msra.mxu0 0.0
  %413 = vmatprep.subr.mxu0 0.0
  %414 = vmatpush1.msra.mxu0 0.0
  %415 = vmatprep.subr.mxu0 0.0
  %416 = vmatpush1.msra.mxu0 0.0
  %417 = vmatprep.subr.mxu0 0.0
  %418 = vmatpush1.msra.mxu0 0.0
  %419 = vmatprep.subr.mxu0 0.0
  %420 = vmatpush1.msra.mxu0 0.0
  %421 = vmatprep.mubr.f32.mxu0 0.0
  %422 = vmatmul.mubr.f32.gmra.mrb[0].mxu0 %v355
  %v423 = vpop.f32.mrb[0].mxu0
  %v424 = vadd.f32 0.0, %v423
  %v425 = vpop.f32.mrb[0].mxu0
  %426 = vdwg.mxu0
  %v427 = vadd.f32 %v351, %v424
  %v428 = vmul.f32 %v427, %v228
  %v429 = vtanh.pop %v428
  %v430 = vmul.f32 %v228, %v429
  %v431 = vadd.f32 %v430, %v229
  %v432 = vmul.f32 %v431, %v343
  %434 = vrot.lane.b32.xlu0 %v431, 64
  %v435 = vpop.permute.xlu0 %434
  %v437 = vmul.f32 %v431, %v435
  %439 = vrot.lane.b32.xlu0 %v437, 32
  %v440 = vpop.permute.xlu0 %439
  %v442 = vadd.f32 %v432, %v440
  %v443 = vtanh.pop %v442
  %445 = vrot.lane.b32.xlu0 %v443, 64
  %v446 = vpop.permute.xlu0 %445
  %v448 = vmul.f32 %v431, %v446
  %s449 = scalar_lea.vmem [#allocation2], 6
  %v450 = vld [vmem:[%s449] sm:$0x3]
  %452 = vrot.lane.b32.xlu0 %v448, 32
  %v453 = vpop.permute.xlu0 %452
  %v454 = vsel %vm251, %v453, 0
  %456 = vmatprep.subr.mxu0 0.0
  %457 = vmatpush1.msra.mxu0 %v219
  %458 = vmatprep.subr.mxu0 0.0
  %459 = vmatpush1.msra.mxu0 %v220
  %460 = vmatprep.subr.mxu0 0.0
  %461 = vmatpush1.msra.mxu0 %v221
  %462 = vmatprep.subr.mxu0 0.0
  %463 = vmatpush1.msra.mxu0 %v222
  %464 = vmatprep.subr.mxu0 0.0
  %465 = vmatpush1.msra.mxu0 0.0
  %466 = vmatprep.subr.mxu0 0.0
  %467 = vmatpush1.msra.mxu0 0.0
  %468 = vmatprep.subr.mxu0 0.0
  %469 = vmatpush1.msra.mxu0 0.0
  %470 = vmatprep.subr.mxu0 0.0
  %471 = vmatpush1.msra.mxu0 0.0
  %472 = vmatprep.subr.mxu0 0.0
  %473 = vmatpush1.msra.mxu0 0.0
  %474 = vmatprep.subr.mxu0 0.0
  %475 = vmatpush1.msra.mxu0 0.0
  %476 = vmatprep.subr.mxu0 0.0
  %477 = vmatpush1.msra.mxu0 0.0
  %478 = vmatprep.subr.mxu0 0.0
  %479 = vmatpush1.msra.mxu0 0.0
  %480 = vmatprep.subr.mxu0 0.0
  %481 = vmatpush1.msra.mxu0 0.0
  %482 = vmatprep.subr.mxu0 0.0
  %483 = vmatpush1.msra.mxu0 0.0
  %484 = vmatprep.subr.mxu0 0.0
  %485 = vmatpush1.msra.mxu0 0.0
  %486 = vmatprep.subr.mxu0 0.0
  %487 = vmatpush1.msra.mxu0 0.0
  %488 = vmatprep.subr.mxu0 0.0
  %489 = vmatpush1.msra.mxu0 0.0
  %490 = vmatprep.subr.mxu0 0.0
  %491 = vmatpush1.msra.mxu0 0.0
  %492 = vmatprep.subr.mxu0 0.0
  %493 = vmatpush1.msra.mxu0 0.0
  %494 = vmatprep.subr.mxu0 0.0
  %495 = vmatpush1.msra.mxu0 0.0
  %496 = vmatprep.subr.mxu0 0.0
  %497 = vmatpush1.msra.mxu0 0.0
  %498 = vmatprep.subr.mxu0 0.0
  %499 = vmatpush1.msra.mxu0 0.0
  %500 = vmatprep.subr.mxu0 0.0
  %501 = vmatpush1.msra.mxu0 0.0
  %502 = vmatprep.subr.mxu0 0.0
  %503 = vmatpush1.msra.mxu0 0.0
  %504 = vmatprep.subr.mxu0 0.0
  %505 = vmatpush1.msra.mxu0 0.0
  %506 = vmatprep.subr.mxu0 0.0
  %507 = vmatpush1.msra.mxu0 0.0
  %508 = vmatprep.subr.mxu0 0.0
  %509 = vmatpush1.msra.mxu0 0.0
  %510 = vmatprep.subr.mxu0 0.0
  %511 = vmatpush1.msra.mxu0 0.0
  %512 = vmatprep.subr.mxu0 0.0
  %513 = vmatpush1.msra.mxu0 0.0
  %514 = vmatprep.subr.mxu0 0.0
  %515 = vmatpush1.msra.mxu0 0.0
  %516 = vmatprep.subr.mxu0 0.0
  %517 = vmatpush1.msra.mxu0 0.0
  %518 = vmatprep.subr.mxu0 0.0
  %519 = vmatpush1.msra.mxu0 0.0
  %520 = vmatprep.mubr.f32.mxu0 0.0
  %521 = vmatmul.mubr.f32.gmra.mrb[0].mxu0 %v454
  %v522 = vpop.f32.mrb[0].mxu0
  %v523 = vadd.f32 0.0, %v522
  %v524 = vpop.f32.mrb[0].mxu0
  %525 = vdwg.mxu0
  %v526 = vadd.f32 %v450, %v523
  %v527 = vmul.f32 %v526, %v228
  %v528 = vtanh.pop %v527
  %v529 = vmul.f32 %v228, %v528
  %v530 = vadd.f32 %v529, %v229
  %v531 = vmul.f32 %v530, %v442
  %533 = vrot.lane.b32.xlu0 %v530, 64
  %v534 = vpop.permute.xlu0 %533
  %v536 = vmul.f32 %v530, %v534
  %538 = vrot.lane.b32.xlu0 %v536, 32
  %v539 = vpop.permute.xlu0 %538
  %v541 = vadd.f32 %v531, %v539
  %v542 = vtanh.pop %v541
  %544 = vrot.lane.b32.xlu0 %v542, 64
  %v545 = vpop.permute.xlu0 %544
  %v547 = vmul.f32 %v530, %v545
  %s548 = scalar_lea.vmem [#allocation2], 8
  %v549 = vld [vmem:[%s548] sm:$0x3]
  %551 = vrot.lane.b32.xlu0 %v547, 32
  %v552 = vpop.permute.xlu0 %551
  %v553 = vsel %vm251, %v552, 0
  %555 = vmatprep.subr.mxu0 0.0
  %556 = vmatpush1.msra.mxu0 %v219
  %557 = vmatprep.subr.mxu0 0.0
  %558 = vmatpush1.msra.mxu0 %v220
  %559 = vmatprep.subr.mxu0 0.0
  %560 = vmatpush1.msra.mxu0 %v221
  %561 = vmatprep.subr.mxu0 0.0
  %562 = vmatpush1.msra.mxu0 %v222
  %563 = vmatprep.subr.mxu0 0.0
  %564 = vmatpush1.msra.mxu0 0.0
  %565 = vmatprep.subr.mxu0 0.0
  %566 = vmatpush1.msra.mxu0 0.0
  %567 = vmatprep.subr.mxu0 0.0
  %568 = vmatpush1.msra.mxu0 0.0
  %569 = vmatprep.subr.mxu0 0.0
  %570 = vmatpush1.msra.mxu0 0.0
  %571 = vmatprep.subr.mxu0 0.0
  %572 = vmatpush1.msra.mxu0 0.0
  %573 = vmatprep.subr.mxu0 0.0
  %574 = vmatpush1.msra.mxu0 0.0
  %575 = vmatprep.subr.mxu0 0.0
  %576 = vmatpush1.msra.mxu0 0.0
  %577 = vmatprep.subr.mxu0 0.0
  %578 = vmatpush1.msra.mxu0 0.0
  %579 = vmatprep.subr.mxu0 0.0
  %580 = vmatpush1.msra.mxu0 0.0
  %581 = vmatprep.subr.mxu0 0.0
  %582 = vmatpush1.msra.mxu0 0.0
  %583 = vmatprep.subr.mxu0 0.0
  %584 = vmatpush1.msra.mxu0 0.0
  %585 = vmatprep.subr.mxu0 0.0
  %586 = vmatpush1.msra.mxu0 0.0
  %587 = vmatprep.subr.mxu0 0.0
  %588 = vmatpush1.msra.mxu0 0.0
  %589 = vmatprep.subr.mxu0 0.0
  %590 = vmatpush1.msra.mxu0 0.0
  %591 = vmatprep.subr.mxu0 0.0
  %592 = vmatpush1.msra.mxu0 0.0
  %593 = vmatprep.subr.mxu0 0.0
  %594 = vmatpush1.msra.mxu0 0.0
  %595 = vmatprep.subr.mxu0 0.0
  %596 = vmatpush1.msra.mxu0 0.0
  %597 = vmatprep.subr.mxu0 0.0
  %598 = vmatpush1.msra.mxu0 0.0
  %599 = vmatprep.subr.mxu0 0.0
  %600 = vmatpush1.msra.mxu0 0.0
  %601 = vmatprep.subr.mxu0 0.0
  %602 = vmatpush1.msra.mxu0 0.0
  %603 = vmatprep.subr.mxu0 0.0
  %604 = vmatpush1.msra.mxu0 0.0
  %605 = vmatprep.subr.mxu0 0.0
  %606 = vmatpush1.msra.mxu0 0.0
  %607 = vmatprep.subr.mxu0 0.0
  %608 = vmatpush1.msra.mxu0 0.0
  %609 = vmatprep.subr.mxu0 0.0
  %610 = vmatpush1.msra.mxu0 0.0
  %611 = vmatprep.subr.mxu0 0.0
  %612 = vmatpush1.msra.mxu0 0.0
  %613 = vmatprep.subr.mxu0 0.0
  %614 = vmatpush1.msra.mxu0 0.0
  %615 = vmatprep.subr.mxu0 0.0
  %616 = vmatpush1.msra.mxu0 0.0
  %617 = vmatprep.subr.mxu0 0.0
  %618 = vmatpush1.msra.mxu0 0.0
  %619 = vmatprep.mubr.f32.mxu0 0.0
  %620 = vmatmul.mubr.f32.gmra.mrb[0].mxu0 %v553
  %v621 = vpop.f32.mrb[0].mxu0
  %v622 = vadd.f32 0.0, %v621
  %v623 = vpop.f32.mrb[0].mxu0
  %624 = vdwg.mxu0
  %v625 = vadd.f32 %v549, %v622
  %v626 = vmul.f32 %v625, %v228
  %v627 = vtanh.pop %v626
  %v628 = vmul.f32 %v228, %v627
  %v629 = vadd.f32 %v628, %v229
  %v630 = vmul.f32 %v629, %v541
  %632 = vrot.lane.b32.xlu0 %v629, 64
  %v633 = vpop.permute.xlu0 %632
  %v635 = vmul.f32 %v629, %v633
  %637 = vrot.lane.b32.xlu0 %v635, 32
  %v638 = vpop.permute.xlu0 %637
  %v640 = vadd.f32 %v630, %v638
  %v641 = vtanh.pop %v640
  %643 = vrot.lane.b32.xlu0 %v641, 64
  %v644 = vpop.permute.xlu0 %643
  %v646 = vmul.f32 %v629, %v644
  %s647 = scalar_lea.vmem [#allocation2], 10
  %v648 = vld [vmem:[%s647] sm:$0x3]
  %650 = vrot.lane.b32.xlu0 %v646, 32
  %v651 = vpop.permute.xlu0 %650
  %v652 = vsel %vm251, %v651, 0
  %654 = vmatprep.subr.mxu0 0.0
  %655 = vmatpush1.msra.mxu0 %v219
  %656 = vmatprep.subr.mxu0 0.0
  %657 = vmatpush1.msra.mxu0 %v220
  %658 = vmatprep.subr.mxu0 0.0
  %659 = vmatpush1.msra.mxu0 %v221
  %660 = vmatprep.subr.mxu0 0.0
  %661 = vmatpush1.msra.mxu0 %v222
  %662 = vmatprep.subr.mxu0 0.0
  %663 = vmatpush1.msra.mxu0 0.0
  %664 = vmatprep.subr.mxu0 0.0
  %665 = vmatpush1.msra.mxu0 0.0
  %666 = vmatprep.subr.mxu0 0.0
  %667 = vmatpush1.msra.mxu0 0.0
  %668 = vmatprep.subr.mxu0 0.0
  %669 = vmatpush1.msra.mxu0 0.0
  %670 = vmatprep.subr.mxu0 0.0
  %671 = vmatpush1.msra.mxu0 0.0
  %672 = vmatprep.subr.mxu0 0.0
  %673 = vmatpush1.msra.mxu0 0.0
  %674 = vmatprep.subr.mxu0 0.0
  %675 = vmatpush1.msra.mxu0 0.0
  %676 = vmatprep.subr.mxu0 0.0
  %677 = vmatpush1.msra.mxu0 0.0
  %678 = vmatprep.subr.mxu0 0.0
  %679 = vmatpush1.msra.mxu0 0.0
  %680 = vmatprep.subr.mxu0 0.0
  %681 = vmatpush1.msra.mxu0 0.0
  %682 = vmatprep.subr.mxu0 0.0
  %683 = vmatpush1.msra.mxu0 0.0
  %684 = vmatprep.subr.mxu0 0.0
  %685 = vmatpush1.msra.mxu0 0.0
  %686 = vmatprep.subr.mxu0 0.0
  %687 = vmatpush1.msra.mxu0 0.0
  %688 = vmatprep.subr.mxu0 0.0
  %689 = vmatpush1.msra.mxu0 0.0
  %690 = vmatprep.subr.mxu0 0.0
  %691 = vmatpush1.msra.mxu0 0.0
  %692 = vmatprep.subr.mxu0 0.0
  %693 = vmatpush1.msra.mxu0 0.0
  %694 = vmatprep.subr.mxu0 0.0
  %695 = vmatpush1.msra.mxu0 0.0
  %696 = vmatprep.subr.mxu0 0.0
  %697 = vmatpush1.msra.mxu0 0.0
  %698 = vmatprep.subr.mxu0 0.0
  %699 = vmatpush1.msra.mxu0 0.0
  %700 = vmatprep.subr.mxu0 0.0
  %701 = vmatpush1.msra.mxu0 0.0
  %702 = vmatprep.subr.mxu0 0.0
  %703 = vmatpush1.msra.mxu0 0.0
  %704 = vmatprep.subr.mxu0 0.0
  %705 = vmatpush1.msra.mxu0 0.0
  %706 = vmatprep.subr.mxu0 0.0
  %707 = vmatpush1.msra.mxu0 0.0
  %708 = vmatprep.subr.mxu0 0.0
  %709 = vmatpush1.msra.mxu0 0.0
  %710 = vmatprep.subr.mxu0 0.0
  %711 = vmatpush1.msra.mxu0 0.0
  %712 = vmatprep.subr.mxu0 0.0
  %713 = vmatpush1.msra.mxu0 0.0
  %714 = vmatprep.subr.mxu0 0.0
  %715 = vmatpush1.msra.mxu0 0.0
  %716 = vmatprep.subr.mxu0 0.0
  %717 = vmatpush1.msra.mxu0 0.0
  %718 = vmatprep.mubr.f32.mxu0 0.0
  %719 = vmatmul.mubr.f32.gmra.mrb[0].mxu0 %v652
  %v720 = vpop.f32.mrb[0].mxu0
  %v721 = vadd.f32 0.0, %v720
  %v722 = vpop.f32.mrb[0].mxu0
  %723 = vdwg.mxu0
  %v724 = vadd.f32 %v648, %v721
  %v725 = vmul.f32 %v724, %v228
  %v726 = vtanh.pop %v725
  %v727 = vmul.f32 %v228, %v726
  %v728 = vadd.f32 %v727, %v229
  %v729 = vmul.f32 %v728, %v640
  %731 = vrot.lane.b32.xlu0 %v728, 64
  %v732 = vpop.permute.xlu0 %731
  %v734 = vmul.f32 %v728, %v732
  %736 = vrot.lane.b32.xlu0 %v734, 32
  %v737 = vpop.permute.xlu0 %736
  %v739 = vadd.f32 %v729, %v737
  %v740 = vtanh.pop %v739
  %742 = vrot.lane.b32.xlu0 %v740, 64
  %v743 = vpop.permute.xlu0 %742
  %v745 = vmul.f32 %v728, %v743
  %s746 = scalar_lea.vmem [#allocation2], 12
  %v747 = vld [vmem:[%s746] sm:$0x3]
  %749 = vrot.lane.b32.xlu0 %v745, 32
  %v750 = vpop.permute.xlu0 %749
  %v751 = vsel %vm251, %v750, 0
  %753 = vmatprep.subr.mxu0 0.0
  %754 = vmatpush1.msra.mxu0 %v219
  %755 = vmatprep.subr.mxu0 0.0
  %756 = vmatpush1.msra.mxu0 %v220
  %757 = vmatprep.subr.mxu0 0.0
  %758 = vmatpush1.msra.mxu0 %v221
  %759 = vmatprep.subr.mxu0 0.0
  %760 = vmatpush1.msra.mxu0 %v222
  %761 = vmatprep.subr.mxu0 0.0
  %762 = vmatpush1.msra.mxu0 0.0
  %763 = vmatprep.subr.mxu0 0.0
  %764 = vmatpush1.msra.mxu0 0.0
  %765 = vmatprep.subr.mxu0 0.0
  %766 = vmatpush1.msra.mxu0 0.0
  %767 = vmatprep.subr.mxu0 0.0
  %768 = vmatpush1.msra.mxu0 0.0
  %769 = vmatprep.subr.mxu0 0.0
  %770 = vmatpush1.msra.mxu0 0.0
  %771 = vmatprep.subr.mxu0 0.0
  %772 = vmatpush1.msra.mxu0 0.0
  %773 = vmatprep.subr.mxu0 0.0
  %774 = vmatpush1.msra.mxu0 0.0
  %775 = vmatprep.subr.mxu0 0.0
  %776 = vmatpush1.msra.mxu0 0.0
  %777 = vmatprep.subr.mxu0 0.0
  %778 = vmatpush1.msra.mxu0 0.0
  %779 = vmatprep.subr.mxu0 0.0
  %780 = vmatpush1.msra.mxu0 0.0
  %781 = vmatprep.subr.mxu0 0.0
  %782 = vmatpush1.msra.mxu0 0.0
  %783 = vmatprep.subr.mxu0 0.0
  %784 = vmatpush1.msra.mxu0 0.0
  %785 = vmatprep.subr.mxu0 0.0
  %786 = vmatpush1.msra.mxu0 0.0
  %787 = vmatprep.subr.mxu0 0.0
  %788 = vmatpush1.msra.mxu0 0.0
  %789 = vmatprep.subr.mxu0 0.0
  %790 = vmatpush1.msra.mxu0 0.0
  %791 = vmatprep.subr.mxu0 0.0
  %792 = vmatpush1.msra.mxu0 0.0
  %793 = vmatprep.subr.mxu0 0.0
  %794 = vmatpush1.msra.mxu0 0.0
  %795 = vmatprep.subr.mxu0 0.0
  %796 = vmatpush1.msra.mxu0 0.0
  %797 = vmatprep.subr.mxu0 0.0
  %798 = vmatpush1.msra.mxu0 0.0
  %799 = vmatprep.subr.mxu0 0.0
  %800 = vmatpush1.msra.mxu0 0.0
  %801 = vmatprep.subr.mxu0 0.0
  %802 = vmatpush1.msra.mxu0 0.0
  %803 = vmatprep.subr.mxu0 0.0
  %804 = vmatpush1.msra.mxu0 0.0
  %805 = vmatprep.subr.mxu0 0.0
  %806 = vmatpush1.msra.mxu0 0.0
  %807 = vmatprep.subr.mxu0 0.0
  %808 = vmatpush1.msra.mxu0 0.0
  %809 = vmatprep.subr.mxu0 0.0
  %810 = vmatpush1.msra.mxu0 0.0
  %811 = vmatprep.subr.mxu0 0.0
  %812 = vmatpush1.msra.mxu0 0.0
  %813 = vmatprep.subr.mxu0 0.0
  %814 = vmatpush1.msra.mxu0 0.0
  %815 = vmatprep.subr.mxu0 0.0
  %816 = vmatpush1.msra.mxu0 0.0
  %817 = vmatprep.mubr.f32.mxu0 0.0
  %818 = vmatmul.mubr.f32.gmra.mrb[0].mxu0 %v751
  %v819 = vpop.f32.mrb[0].mxu0
  %v820 = vadd.f32 0.0, %v819
  %v821 = vpop.f32.mrb[0].mxu0
  %822 = vdwg.mxu0
  %v823 = vadd.f32 %v747, %v820
  %v824 = vmul.f32 %v823, %v228
  %v825 = vtanh.pop %v824
  %v826 = vmul.f32 %v228, %v825
  %v827 = vadd.f32 %v826, %v229
  %v828 = vmul.f32 %v827, %v739
  %830 = vrot.lane.b32.xlu0 %v827, 64
  %v831 = vpop.permute.xlu0 %830
  %v833 = vmul.f32 %v827, %v831
  %835 = vrot.lane.b32.xlu0 %v833, 32
  %v836 = vpop.permute.xlu0 %835
  %v838 = vadd.f32 %v828, %v836
  %v839 = vtanh.pop %v838
  %841 = vrot.lane.b32.xlu0 %v839, 64
  %v842 = vpop.permute.xlu0 %841
  %v844 = vmul.f32 %v827, %v842
  %s845 = scalar_lea.vmem [#allocation2], 14
  %v846 = vld [vmem:[%s845] sm:$0x3]
  %848 = vrot.lane.b32.xlu0 %v844, 32
  %v849 = vpop.permute.xlu0 %848
  %v850 = vsel %vm251, %v849, 0
  %852 = vmatprep.subr.mxu0 0.0
  %853 = vmatpush1.msra.mxu0 %v219
  %854 = vmatprep.subr.mxu0 0.0
  %855 = vmatpush1.msra.mxu0 %v220
  %856 = vmatprep.subr.mxu0 0.0
  %857 = vmatpush1.msra.mxu0 %v221
  %858 = vmatprep.subr.mxu0 0.0
  %859 = vmatpush1.msra.mxu0 %v222
  %860 = vmatprep.subr.mxu0 0.0
  %861 = vmatpush1.msra.mxu0 0.0
  %862 = vmatprep.subr.mxu0 0.0
  %863 = vmatpush1.msra.mxu0 0.0
  %864 = vmatprep.subr.mxu0 0.0
  %865 = vmatpush1.msra.mxu0 0.0
  %866 = vmatprep.subr.mxu0 0.0
  %867 = vmatpush1.msra.mxu0 0.0
  %868 = vmatprep.subr.mxu0 0.0
  %869 = vmatpush1.msra.mxu0 0.0
  %870 = vmatprep.subr.mxu0 0.0
  %871 = vmatpush1.msra.mxu0 0.0
  %872 = vmatprep.subr.mxu0 0.0
  %873 = vmatpush1.msra.mxu0 0.0
  %874 = vmatprep.subr.mxu0 0.0
  %875 = vmatpush1.msra.mxu0 0.0
  %876 = vmatprep.subr.mxu0 0.0
  %877 = vmatpush1.msra.mxu0 0.0
  %878 = vmatprep.subr.mxu0 0.0
  %879 = vmatpush1.msra.mxu0 0.0
  %880 = vmatprep.subr.mxu0 0.0
  %881 = vmatpush1.msra.mxu0 0.0
  %882 = vmatprep.subr.mxu0 0.0
  %883 = vmatpush1.msra.mxu0 0.0
  %884 = vmatprep.subr.mxu0 0.0
  %885 = vmatpush1.msra.mxu0 0.0
  %886 = vmatprep.subr.mxu0 0.0
  %887 = vmatpush1.msra.mxu0 0.0
  %888 = vmatprep.subr.mxu0 0.0
  %889 = vmatpush1.msra.mxu0 0.0
  %890 = vmatprep.subr.mxu0 0.0
  %891 = vmatpush1.msra.mxu0 0.0
  %892 = vmatprep.subr.mxu0 0.0
  %893 = vmatpush1.msra.mxu0 0.0
  %894 = vmatprep.subr.mxu0 0.0
  %895 = vmatpush1.msra.mxu0 0.0
  %896 = vmatprep.subr.mxu0 0.0
  %897 = vmatpush1.msra.mxu0 0.0
  %898 = vmatprep.subr.mxu0 0.0
  %899 = vmatpush1.msra.mxu0 0.0
  %900 = vmatprep.subr.mxu0 0.0
  %901 = vmatpush1.msra.mxu0 0.0
  %902 = vmatprep.subr.mxu0 0.0
  %903 = vmatpush1.msra.mxu0 0.0
  %904 = vmatprep.subr.mxu0 0.0
  %905 = vmatpush1.msra.mxu0 0.0
  %906 = vmatprep.subr.mxu0 0.0
  %907 = vmatpush1.msra.mxu0 0.0
  %908 = vmatprep.subr.mxu0 0.0
  %909 = vmatpush1.msra.mxu0 0.0
  %910 = vmatprep.subr.mxu0 0.0
  %911 = vmatpush1.msra.mxu0 0.0
  %912 = vmatprep.subr.mxu0 0.0
  %913 = vmatpush1.msra.mxu0 0.0
  %914 = vmatprep.subr.mxu0 0.0
  %915 = vmatpush1.msra.mxu0 0.0
  %916 = vmatprep.mubr.f32.mxu0 0.0
  %917 = vmatmul.mubr.f32.gmra.mrb[0].mxu0 %v850
  %v918 = vpop.f32.mrb[0].mxu0
  %v919 = vadd.f32 0.0, %v918
  %v920 = vpop.f32.mrb[0].mxu0
  %921 = vdwg.mxu0
  %v922 = vadd.f32 %v846, %v919
  %v923 = vmul.f32 %v922, %v228
  %v924 = vtanh.pop %v923
  %v925 = vmul.f32 %v228, %v924
  %v926 = vadd.f32 %v925, %v229
  %v927 = vmul.f32 %v926, %v838
  %929 = vrot.lane.b32.xlu0 %v926, 64
  %v930 = vpop.permute.xlu0 %929
  %v932 = vmul.f32 %v926, %v930
  %934 = vrot.lane.b32.xlu0 %v932, 32
  %v935 = vpop.permute.xlu0 %934
  %v937 = vadd.f32 %v927, %v935
  %v938 = vtanh.pop %v937
  %940 = vrot.lane.b32.xlu0 %v938, 64
  %v941 = vpop.permute.xlu0 %940
  %v943 = vmul.f32 %v926, %v941
  %v944 = vld [vmem:[%s4] sm:$0xff]
  %v945 = vld [vmem:[%s4 + $0x8] sm:$0xff]
  %v946 = vld [vmem:[%s4 + $0x10] sm:$0xff]
  %v947 = vld [vmem:[%s4 + $0x18] sm:$0xff]
  %v948 = vld [vmem:[#allocation3] sm:$0x1]
  %v950 = vlaneseq
  %v951 = vshrl.u32 %v950, 7
  %v952 = vsub.s32 0, %v951
  %v953 = vrot.slane %v948, %v952
  %956 = vrot.lane.b32.xlu0 %v943, 32
  %v957 = vpop.permute.xlu0 %956
  %v958 = vsel %vm251, %v957, 0
  %960 = vmatprep.subr.mxu0 0.0
  %961 = vmatpush1.msra.mxu0 %v944
  %962 = vmatprep.subr.mxu0 0.0
  %963 = vmatpush1.msra.mxu0 %v945
  %964 = vmatprep.subr.mxu0 0.0
  %965 = vmatpush1.msra.mxu0 %v946
  %966 = vmatprep.subr.mxu0 0.0
  %967 = vmatpush1.msra.mxu0 %v947
  %968 = vmatprep.subr.mxu0 0.0
  %969 = vmatpush1.msra.mxu0 0.0
  %970 = vmatprep.subr.mxu0 0.0
  %971 = vmatpush1.msra.mxu0 0.0
  %972 = vmatprep.subr.mxu0 0.0
  %973 = vmatpush1.msra.mxu0 0.0
  %974 = vmatprep.subr.mxu0 0.0
  %975 = vmatpush1.msra.mxu0 0.0
  %976 = vmatprep.subr.mxu0 0.0
  %977 = vmatpush1.msra.mxu0 0.0
  %978 = vmatprep.subr.mxu0 0.0
  %979 = vmatpush1.msra.mxu0 0.0
  %980 = vmatprep.subr.mxu0 0.0
  %981 = vmatpush1.msra.mxu0 0.0
  %982 = vmatprep.subr.mxu0 0.0
  %983 = vmatpush1.msra.mxu0 0.0
  %984 = vmatprep.subr.mxu0 0.0
  %985 = vmatpush1.msra.mxu0 0.0
  %986 = vmatprep.subr.mxu0 0.0
  %987 = vmatpush1.msra.mxu0 0.0
  %988 = vmatprep.subr.mxu0 0.0
  %989 = vmatpush1.msra.mxu0 0.0
  %990 = vmatprep.subr.mxu0 0.0
  %991 = vmatpush1.msra.mxu0 0.0
  %992 = vmatprep.subr.mxu0 0.0
  %993 = vmatpush1.msra.mxu0 0.0
  %994 = vmatprep.subr.mxu0 0.0
  %995 = vmatpush1.msra.mxu0 0.0
  %996 = vmatprep.subr.mxu0 0.0
  %997 = vmatpush1.msra.mxu0 0.0
  %998 = vmatprep.subr.mxu0 0.0
  %999 = vmatpush1.msra.mxu0 0.0
  %1000 = vmatprep.subr.mxu0 0.0
  %1001 = vmatpush1.msra.mxu0 0.0
  %1002 = vmatprep.subr.mxu0 0.0
  %1003 = vmatpush1.msra.mxu0 0.0
  %1004 = vmatprep.subr.mxu0 0.0
  %1005 = vmatpush1.msra.mxu0 0.0
  %1006 = vmatprep.subr.mxu0 0.0
  %1007 = vmatpush1.msra.mxu0 0.0
  %1008 = vmatprep.subr.mxu0 0.0
  %1009 = vmatpush1.msra.mxu0 0.0
  %1010 = vmatprep.subr.mxu0 0.0
  %1011 = vmatpush1.msra.mxu0 0.0
  %1012 = vmatprep.subr.mxu0 0.0
  %1013 = vmatpush1.msra.mxu0 0.0
  %1014 = vmatprep.subr.mxu0 0.0
  %1015 = vmatpush1.msra.mxu0 0.0
  %1016 = vmatprep.subr.mxu0 0.0
  %1017 = vmatpush1.msra.mxu0 0.0
  %1018 = vmatprep.subr.mxu0 0.0
  %1019 = vmatpush1.msra.mxu0 0.0
  %1020 = vmatprep.subr.mxu0 0.0
  %1021 = vmatpush1.msra.mxu0 0.0
  %1022 = vmatprep.subr.mxu0 0.0
  %1023 = vmatpush1.msra.mxu0 0.0
  %1024 = vmatprep.mubr.f32.mxu0 0.0
  %1025 = vmatmul.mubr.f32.gmra.mrb[0].mxu0 %v958
  %v1026 = vpop.f32.mrb[0].mxu0
  %v1027 = vadd.f32 %v953, %v1026
  %v1028 = vpop.f32.mrb[0].mxu0
  %1029 = vdwg.mxu0
  %vm1030 = vcmask 1024
  %1031 = vst.msk [vmem:[%s6] sm:$0x3] %vm1030, %v1027
  // Predicated region
  $region26: #{tpu_custom_call.1} parent=0 // pred_check
    _
  $region27: #{tpu_custom_call.1} parent=0 // pred_check_branch
    %1033 = sbr.rel (0) target = $region29
  $region28: #{tpu_custom_call.1} parent=0 // pred_region
    _
  $region29: #{tpu_custom_call.1} parent=0 // pred_fallthru
    _
  // Predicated region
  $region30: #{tpu_custom_call.1} parent=0 // pred_check
    _
  $region31: #{tpu_custom_call.1} parent=0 // pred_check_branch
    %1035 = sbr.rel (0) target = $region33
  $region32: #{tpu_custom_call.1} parent=0 // pred_region
    _
  $region33: #{tpu_custom_call.1} parent=0 // pred_fallthru
    _

</llo_original>
